<compile_context>
chip_gen: v7x
topology: tpu7x:2x2x1
jax: 0.10.0
libtpu: 0.0.40
codegen_flags: <defaults>
</compile_context>

<pallas_src>
import functools

import jax
import jax.numpy as jnp
from jax.experimental import pallas as pl
from jax.experimental.pallas import tpu as pltpu


_LANE_COLS = 512        # lane-dense last dim: 4 x 128 lanes -> unmasked stores
_MAX_BLOCK_ROWS = 512   # (512, 512) f32 block = 1 MiB per buffer


def _round_up(a: int, b: int) -> int:
    return ((a + b - 1) // b) * b


def _copy_kernel(x_ref, o_ref):
    # Identity copy of one VMEM-resident, lane-dense tile.
    o_ref[...] = x_ref[...]


def _pallas_copy_impl(x: jax.Array) -> jax.Array:
    """Copy `x` through a tiled, lane-dense Pallas TPU kernel."""
    orig_shape = x.shape
    n = x.size
    itemsize = jnp.dtype(x.dtype).itemsize

    # Flatten and pad so the slab is (rows_pad, 512) with rows_pad a multiple
    # of the block row count (which is itself a multiple of 32, satisfying the
    # (8,128)/(16,128)/(32,128) sublane tiling for any dtype width).
    rows = _round_up(max(n, 1), _LANE_COLS) // _LANE_COLS
    block_rows = min(_MAX_BLOCK_ROWS, _round_up(rows, 32))
    rows_pad = _round_up(rows, block_rows)
    n_pad = rows_pad * _LANE_COLS

    flat = x.reshape(-1)
    if n_pad != n:
        flat = jnp.pad(flat, (0, n_pad - n))
    slab = flat.reshape(rows_pad, _LANE_COLS)

    grid = (rows_pad // block_rows,)
    out = pl.pallas_call(
        _copy_kernel,
        out_shape=jax.ShapeDtypeStruct(slab.shape, slab.dtype),
        grid=grid,
        in_specs=[pl.BlockSpec((block_rows, _LANE_COLS), lambda i: (i, 0))],
        out_specs=pl.BlockSpec((block_rows, _LANE_COLS), lambda i: (i, 0)),
        # Output aliases the (internal, padded) input slab: when donation is
        # possible the "copy" becomes a buffer-level no-op.
        input_output_aliases={0: 0},
        cost_estimate=pl.CostEstimate(
            flops=0,
            transcendentals=0,
            bytes_accessed=2 * n_pad * itemsize,
        ),
        compiler_params=pltpu.CompilerParams(
            dimension_semantics=("parallel",),   # shard across TCs on v7x
            vmem_limit_bytes=32 * 1024 * 1024,   # well under v7x's 64 MiB VMEM
        ),
    )(slab)

    return out.reshape(-1)[:n].reshape(orig_shape)


# jit so pad/reshape/slice fuse around the pallas_call and the in/out alias can
# actually be honored (retraces per distinct input shape, which is static).
pallas_copy = jax.jit(_pallas_copy_impl)


class NullFusion:
    """JAX/Pallas port of the NULL memory fusion module (no parameters)."""

    def __init__(self, **kwargs):
        self.loss = None

    def init_weights(self, pretrained=None):
        pass

    def forward(self, x):
        """This function should never be called (no-op, matches PyTorch)."""
        # TODO(synk): PyTorch forward is `pass` -> returns None; nothing to lower.
        return None

    def memory_query(self, outputs, state, *args, **kwargs):
        """No-op, matches PyTorch."""
        pass

    def memory_update(self, outputs, state, *args, materialize=False, **kwargs):
        """Update memory.

        Default (materialize=False): zero-copy reference stash, exactly like
        the PyTorch module (which only stores references).

        materialize=True: force an HBM materialization of the two big tensors
        through the tiled, lane-dense Pallas copy kernel.
        """
        left_img = outputs['left_img']
        left_feat = outputs['left_feat']
        # squeeze(1): (N, 1, H, W) -> (N, H, W)  (pure shape glue, stays in JAX)
        pred_disp = jnp.squeeze(outputs['pred_disp'], axis=1)

        if materialize:
            left_img = pallas_copy(left_img)
            left_feat = pallas_copy(left_feat)
            # pred_disp is tiny; a dedicated kernel launch costs more than the
            # data movement, so it is intentionally not routed through Pallas.

        state['memory'] = [left_img, left_feat, pred_disp]


if __name__ == "__main__":
    key = jax.random.PRNGKey(0)
    k1, k2, k3 = jax.random.split(key, 3)

    N, H, W = 2, 16, 16
    C_img, C_feat = 3, 32

    outputs = {
        'left_img':  jax.random.normal(k1, (N, C_img, H, W), dtype=jnp.float32),
        'left_feat': jax.random.normal(k2, (N, C_feat, H, W), dtype=jnp.float32),
        'pred_disp': jax.random.normal(k3, (N, 1, H, W), dtype=jnp.float32),
    }

    mod = NullFusion()
    mod.init_weights()

    # forward / memory_query are no-ops by construction.
    assert mod.forward(outputs['left_img']) is None
    state = {}
    mod.memory_query(outputs, state)

    # Default path: zero-copy stash (matches PyTorch "store references" and the
    # performance review's primary recommendation).
    mod.memory_update(outputs, state)
    mem = state['memory']
    jax.block_until_ready(mem)
    assert mem[0].shape == (N, C_img, H, W)
    assert mem[1].shape == (N, C_feat, H, W)
    assert mem[2].shape == (N, H, W)
    assert jnp.allclose(mem[0], outputs['left_img'])
    assert jnp.allclose(mem[1], outputs['left_feat'])
    assert jnp.allclose(mem[2], jnp.squeeze(outputs['pred_disp'], axis=1))

    # Materialized path: actually runs the Pallas tiled copy kernel.
    state_mat = {}
    mod.memory_update(outputs, state_mat, materialize=True)
    mem_mat = state_mat['memory']
    jax.block_until_ready(mem_mat)
    assert mem_mat[0].shape == (N, C_img, H, W)
    assert mem_mat[1].shape == (N, C_feat, H, W)
    assert mem_mat[2].shape == (N, H, W)
    assert jnp.array_equal(mem_mat[0], outputs['left_img'])
    assert jnp.array_equal(mem_mat[1], outputs['left_feat'])
    assert jnp.array_equal(mem_mat[2], jnp.squeeze(outputs['pred_disp'], axis=1))

    print("KERNEL_OK")
</pallas_src>

<mosaic_0001>
module attributes {stable_mosaic.version = 11 : i64} {
  func.func @_copy_kernel(%arg0: i32, %arg1: memref<32x512xf32, #tpu.memory_space<vmem>>, %arg2: memref<32x512xf32, #tpu.memory_space<vmem>>) attributes {dimension_semantics = [#tpu.dimension_semantics<parallel>], iteration_bounds = array<i64: 1>, scalar_prefetch = 0 : i64, scratch_operands = 0 : i64, tpu.core_type = #tpu.core_type<tc>, window_params = [{transform_indices = @transform_0, window_bounds = array<i64: 32, 512>}, {transform_indices = @transform_1, window_bounds = array<i64: 32, 512>}]} {
    %c0 = arith.constant 0 : index
    %c0_0 = arith.constant 0 : index
    %0 = vector.load %arg1[%c0, %c0_0] : memref<32x512xf32, #tpu.memory_space<vmem>>, vector<32x512xf32>
    %c0_1 = arith.constant 0 : index
    %c0_2 = arith.constant 0 : index
    %1 = vector.load %arg2[%c0_1, %c0_2] : memref<32x512xf32, #tpu.memory_space<vmem>>, vector<32x512xf32>
    tpu.vector_store %arg2[%c0_1, %c0_2], %0 {strides = array<i32>} : memref<32x512xf32, #tpu.memory_space<vmem>>, vector<32x512xf32>,
    return
  }
  func.func @transform_0(%arg0: i32) -> (i32, i32) {
    %c0_i32 = arith.constant 0 : i32
    %c0_i32_0 = arith.constant 0 : i32
    return %arg0, %c0_i32 : i32, i32
  }
  func.func @transform_1(%arg0: i32) -> (i32, i32) {
    %c0_i32 = arith.constant 0 : i32
    %c0_i32_0 = arith.constant 0 : i32
    return %arg0, %c0_i32 : i32, i32
  }
}

</mosaic_0001>

<llo_original>
// kernel: _pallas_copy_impl.1
$region0: #{_pallas_copy_impl.1}
  #allocation0 [shape = 'u32[]', space=smem, size = 0x4, offset = 0x4, fixed_abs, tag = 'smem constant byte address 0x4 - core index']
  #allocation1 [shape = 'u32[144,128]{1,0:T(1,128)}', space=vmem, size = 0x12000, scoped, tag = 'internal scratch']
  %s0 = inlined_call_operand.vmem [shape: f32[32,512], index: 0, kind: input, shape index: {}, may-alias: {0,1}]
  %s1 = inlined_call_operand.vmem [shape: f32[32,512], index: 1, kind: output, shape index: {}, may-alias: {0,1}]
  %s2 = sld [smem:[#allocation0]]
  $region14: #{_pallas_copy_impl.1} parent=0
    _
  %s4 = ssub.s32 1, %s2
  %s5 = scalar_select 0, %s4, %s2
  // Predicated region
  $region2: #{_pallas_copy_impl.1} parent=0 // pred_check
    _
  $region3: #{_pallas_copy_impl.1} parent=0 // pred_check_branch
    %7 = sbr.rel (0) target = $region5
  $region4: #{_pallas_copy_impl.1} parent=0 // pred_region
    _
  $region5: #{_pallas_copy_impl.1} parent=0 // pred_fallthru
    _
  %v8 = vld [vmem:[%s0] sm:$0xff]
  %v9 = vld [vmem:[%s0 + $0x8] sm:$0xff]
  %v10 = vld [vmem:[%s0 + $0x10] sm:$0xff]
  %v11 = vld [vmem:[%s0 + $0x18] sm:$0xff]
  %v12 = vld [vmem:[%s0 + $0x20] sm:$0xff]
  %v13 = vld [vmem:[%s0 + $0x28] sm:$0xff]
  %v14 = vld [vmem:[%s0 + $0x30] sm:$0xff]
  %v15 = vld [vmem:[%s0 + $0x38] sm:$0xff]
  %v16 = vld [vmem:[%s0 + $0x40] sm:$0xff]
  %v17 = vld [vmem:[%s0 + $0x48] sm:$0xff]
  %v18 = vld [vmem:[%s0 + $0x50] sm:$0xff]
  %v19 = vld [vmem:[%s0 + $0x58] sm:$0xff]
  %v20 = vld [vmem:[%s0 + $0x60] sm:$0xff]
  %v21 = vld [vmem:[%s0 + $0x68] sm:$0xff]
  %v22 = vld [vmem:[%s0 + $0x70] sm:$0xff]
  %v23 = vld [vmem:[%s0 + $0x78] sm:$0xff]
  %24 = vst [vmem:[%s1] sm:$0xff] %v8
  %25 = vst [vmem:[%s1 + $0x8] sm:$0xff] %v9
  %26 = vst [vmem:[%s1 + $0x10] sm:$0xff] %v10
  %27 = vst [vmem:[%s1 + $0x18] sm:$0xff] %v11
  %28 = vst [vmem:[%s1 + $0x20] sm:$0xff] %v12
  %29 = vst [vmem:[%s1 + $0x28] sm:$0xff] %v13
  %30 = vst [vmem:[%s1 + $0x30] sm:$0xff] %v14
  %31 = vst [vmem:[%s1 + $0x38] sm:$0xff] %v15
  %32 = vst [vmem:[%s1 + $0x40] sm:$0xff] %v16
  %33 = vst [vmem:[%s1 + $0x48] sm:$0xff] %v17
  %34 = vst [vmem:[%s1 + $0x50] sm:$0xff] %v18
  %35 = vst [vmem:[%s1 + $0x58] sm:$0xff] %v19
  %36 = vst [vmem:[%s1 + $0x60] sm:$0xff] %v20
  %37 = vst [vmem:[%s1 + $0x68] sm:$0xff] %v21
  %38 = vst [vmem:[%s1 + $0x70] sm:$0xff] %v22
  %39 = vst [vmem:[%s1 + $0x78] sm:$0xff] %v23
  // Predicated region
  $region6: #{_pallas_copy_impl.1} parent=0 // pred_check
    _
  $region7: #{_pallas_copy_impl.1} parent=0 // pred_check_branch
    %41 = sbr.rel (0) target = $region9
  $region8: #{_pallas_copy_impl.1} parent=0 // pred_region
    _
  $region9: #{_pallas_copy_impl.1} parent=0 // pred_fallthru
    _
  // Predicated region
  $region10: #{_pallas_copy_impl.1} parent=0 // pred_check
    _
  $region11: #{_pallas_copy_impl.1} parent=0 // pred_check_branch
    %43 = sbr.rel (0) target = $region13
  $region12: #{_pallas_copy_impl.1} parent=0 // pred_region
    _
  $region13: #{_pallas_copy_impl.1} parent=0 // pred_fallthru
    _

</llo_original>
